<compile_context>
chip_gen: v5e
topology: v5e:2x2
jax: 0.10.0
libtpu: 0.0.40
codegen_flags: <defaults>
</compile_context>

<pallas_src>
import jax
import jax.numpy as jnp
from jax.experimental import pallas as pl
from jax.experimental.pallas import tpu as pltpu

IN_DIM = 100
HID_DIM = 256
OUT_DIM = 784


def _round_up(x, m):
    return (x + m - 1) // m * m


def _mlp_kernel(x_ref, w1_ref, b1_ref, w2_ref, b2_ref, o_ref):
    # In-kernel bf16 cast of the activations (free VPU work under the DMA/MXU shadow).
    x = x_ref[...].astype(w1_ref.dtype)
    # Layer 1: Linear(100 -> 256) + ReLU.  bf16 MXU matmul, f32 accumulate, f32 epilogue.
    h = jnp.dot(x, w1_ref[...], preferred_element_type=jnp.float32)
    h = jnp.maximum(h + b1_ref[...], 0.0)
    # Layer 2: Linear(256 -> 784) + Sigmoid.
    z = jnp.dot(h.astype(w2_ref.dtype), w2_ref[...], preferred_element_type=jnp.float32)
    z = z + b2_ref[...]
    # sigmoid(z) = 0.5 * tanh(z/2) + 0.5 : one EUP transcendental, stable for large |z|.
    o_ref[...] = (0.5 * jnp.tanh(0.5 * z) + 0.5).astype(o_ref.dtype)


def gan_generator_forward(x, w1, b1, w2, b2, *, tile_m=512, out_dtype=jnp.float32):
    """x: (B, 100) f32 -> (B, 784) `out_dtype` (default f32, matching the PyTorch module).

    w1: (100, 256) bf16, b1: (1, 256) f32, w2: (256, 784) bf16, b2: (1, 784) f32.
    Weights are pre-transposed to (in, out) so the kernel computes x @ W == PyTorch's x @ W.T.
    """
    B = x.shape[0]
    # Batch tile: multiple of 8 sublanes, capped at tile_m, shrunk for small batches.
    tm = min(tile_m, _round_up(B, 8))
    B_pad = _round_up(B, tm)
    if B_pad != B:  # only pad when necessary (avoids an extra XLA pass over x)
        x = jnp.pad(x, ((0, B_pad - B), (0, 0)))

    grid = (B_pad // tm,)

    # Advisory cost hint for the XLA scheduler.
    flops = 2 * B_pad * (IN_DIM * HID_DIM + HID_DIM * OUT_DIM)
    transcendentals = B_pad * OUT_DIM  # one tanh per output element
    bytes_accessed = (
        B_pad * IN_DIM * 4                       # x (f32)
        + IN_DIM * HID_DIM * 2 + HID_DIM * 4     # w1 (bf16) + b1 (f32)
        + HID_DIM * OUT_DIM * 2 + OUT_DIM * 4    # w2 (bf16) + b2 (f32)
        + B_pad * OUT_DIM * jnp.dtype(out_dtype).itemsize  # output
    )

    out = pl.pallas_call(
        _mlp_kernel,
        out_shape=jax.ShapeDtypeStruct((B_pad, OUT_DIM), out_dtype),
        grid=grid,
        in_specs=[
            pl.BlockSpec((tm, IN_DIM), lambda i: (i, 0)),         # x: batch-tiled
            pl.BlockSpec((IN_DIM, HID_DIM), lambda i: (0, 0)),    # w1: VMEM-resident
            pl.BlockSpec((1, HID_DIM), lambda i: (0, 0)),         # b1: VMEM-resident
            pl.BlockSpec((HID_DIM, OUT_DIM), lambda i: (0, 0)),   # w2: VMEM-resident
            pl.BlockSpec((1, OUT_DIM), lambda i: (0, 0)),         # b2: VMEM-resident
        ],
        out_specs=pl.BlockSpec((tm, OUT_DIM), lambda i: (i, 0)),
        compiler_params=pltpu.CompilerParams(
            dimension_semantics=("parallel",),   # shard batch tiles across TCs on v7x
            vmem_limit_bytes=32 << 20,           # ~5 MiB actual residency at tm=512; safe on 64 MiB
        ),
        cost_estimate=pl.CostEstimate(
            flops=flops, transcendentals=transcendentals, bytes_accessed=bytes_accessed
        ),
    )(x, w1, b1, w2, b2)

    if B_pad != B:
        out = out[:B]
    return out


def init_params(key):
    """PyTorch nn.Linear default init: U(-1/sqrt(fan_in), 1/sqrt(fan_in)).

    Weights stored as (in, out) bf16; biases f32 (1, out).
    """
    k1, k2, k3, k4 = jax.random.split(key, 4)
    bound1 = 1.0 / jnp.sqrt(IN_DIM)
    bound2 = 1.0 / jnp.sqrt(HID_DIM)
    w1 = jax.random.uniform(k1, (IN_DIM, HID_DIM), jnp.float32, -bound1, bound1)
    b1 = jax.random.uniform(k2, (1, HID_DIM), jnp.float32, -bound1, bound1)
    w2 = jax.random.uniform(k3, (HID_DIM, OUT_DIM), jnp.float32, -bound2, bound2)
    b2 = jax.random.uniform(k4, (1, OUT_DIM), jnp.float32, -bound2, bound2)
    return w1.astype(jnp.bfloat16), b1, w2.astype(jnp.bfloat16), b2


def _reference(x, w1, b1, w2, b2):
    """Pure-JAX f32 reference using the same (bf16-rounded) parameters."""
    h = jnp.maximum(x @ w1.astype(jnp.float32) + b1, 0.0)
    return jax.nn.sigmoid(h @ w2.astype(jnp.float32) + b2)


if __name__ == "__main__":
    key = jax.random.PRNGKey(0)
    kx, kp = jax.random.split(key)

    B = 8  # small deterministic example (multiple of 8 sublanes -> no batch padding / slice)
    x = jax.random.normal(kx, (B, IN_DIM), jnp.float32)  # latent noise vector z

    w1, b1, w2, b2 = init_params(kp)

    out = gan_generator_forward(x, w1, b1, w2, b2)
    out = jax.block_until_ready(out)

    ref = _reference(x, w1, b1, w2, b2)
    assert out.shape == (B, OUT_DIM)
    assert out.dtype == jnp.float32
    # bf16 weights / in-kernel bf16 activations => looser tolerance than pure f32.
    assert jnp.allclose(out, ref, atol=2e-2, rtol=2e-2), "mismatch vs reference"

    print("KERNEL_OK")
</pallas_src>

<mosaic_0001>
module attributes {stable_mosaic.version = 11 : i64} {
  func.func @_mlp_kernel(%arg0: i32, %arg1: memref<8x100xf32, #tpu.memory_space<vmem>>, %arg2: memref<100x256xbf16, #tpu.memory_space<vmem>>, %arg3: memref<1x256xf32, #tpu.memory_space<vmem>>, %arg4: memref<256x784xbf16, #tpu.memory_space<vmem>>, %arg5: memref<1x784xf32, #tpu.memory_space<vmem>>, %arg6: memref<8x784xf32, #tpu.memory_space<vmem>>) attributes {dimension_semantics = [#tpu.dimension_semantics<parallel>], iteration_bounds = array<i64: 1>, scalar_prefetch = 0 : i64, scratch_operands = 0 : i64, tpu.core_type = #tpu.core_type<tc>, window_params = [{transform_indices = @transform_0, window_bounds = array<i64: 8, 100>}, {pipeline_mode = #tpu.pipeline_mode<synchronous>, transform_indices = @transform_1, window_bounds = array<i64: 100, 256>}, {pipeline_mode = #tpu.pipeline_mode<synchronous>, transform_indices = @transform_2, window_bounds = array<i64: 1, 256>}, {pipeline_mode = #tpu.pipeline_mode<synchronous>, transform_indices = @transform_3, window_bounds = array<i64: 256, 784>}, {pipeline_mode = #tpu.pipeline_mode<synchronous>, transform_indices = @transform_4, window_bounds = array<i64: 1, 784>}, {transform_indices = @transform_5, window_bounds = array<i64: 8, 784>}]} {
    %c0 = arith.constant 0 : index
    %c0_0 = arith.constant 0 : index
    %0 = vector.load %arg1[%c0, %c0_0] : memref<8x100xf32, #tpu.memory_space<vmem>>, vector<8x100xf32>
    %1 = arith.truncf %0 : vector<8x100xf32> to vector<8x100xbf16>
    %c0_1 = arith.constant 0 : index
    %c0_2 = arith.constant 0 : index
    %2 = vector.load %arg2[%c0_1, %c0_2] : memref<100x256xbf16, #tpu.memory_space<vmem>>, vector<100x256xbf16>
    %cst = arith.constant dense<0.000000e+00> : vector<8x256xf32>
    %3 = tpu.matmul %1, %2, %cst {dimension_numbers = #tpu.dot_dimension_numbers<[1], [0], [0], [1], [0, 0, 1, 1], [], []>} : vector<8x100xbf16>, vector<100x256xbf16>, vector<8x256xf32> -> vector<8x256xf32>
    %c0_3 = arith.constant 0 : index
    %c0_4 = arith.constant 0 : index
    %4 = vector.load %arg3[%c0_3, %c0_4] : memref<1x256xf32, #tpu.memory_space<vmem>>, vector<1x256xf32>
    %5 = vector.broadcast %4 : vector<1x256xf32> to vector<8x256xf32>
    %6 = arith.addf %3, %5 : vector<8x256xf32>
    %cst_5 = arith.constant 0.000000e+00 : f32
    %7 = vector.broadcast %cst_5 : f32 to vector<8x256xf32>
    %8 = arith.maximumf %6, %7 : vector<8x256xf32>
    %9 = arith.truncf %8 : vector<8x256xf32> to vector<8x256xbf16>
    %c0_6 = arith.constant 0 : index
    %c0_7 = arith.constant 0 : index
    %10 = vector.load %arg4[%c0_6, %c0_7] : memref<256x784xbf16, #tpu.memory_space<vmem>>, vector<256x784xbf16>
    %cst_8 = arith.constant dense<0.000000e+00> : vector<8x784xf32>
    %11 = tpu.matmul %9, %10, %cst_8 {dimension_numbers = #tpu.dot_dimension_numbers<[1], [0], [0], [1], [0, 0, 1, 1], [], []>} : vector<8x256xbf16>, vector<256x784xbf16>, vector<8x784xf32> -> vector<8x784xf32>
    %c0_9 = arith.constant 0 : index
    %c0_10 = arith.constant 0 : index
    %12 = vector.load %arg5[%c0_9, %c0_10] : memref<1x784xf32, #tpu.memory_space<vmem>>, vector<1x784xf32>
    %13 = vector.broadcast %12 : vector<1x784xf32> to vector<8x784xf32>
    %14 = arith.addf %11, %13 : vector<8x784xf32>
    %cst_11 = arith.constant 5.000000e-01 : f32
    %15 = vector.broadcast %cst_11 : f32 to vector<8x784xf32>
    %16 = arith.mulf %15, %14 : vector<8x784xf32>
    %17 = math.tanh %16 : vector<8x784xf32>
    %cst_12 = arith.constant 5.000000e-01 : f32
    %18 = vector.broadcast %cst_12 : f32 to vector<8x784xf32>
    %19 = arith.mulf %18, %17 : vector<8x784xf32>
    %cst_13 = arith.constant 5.000000e-01 : f32
    %20 = vector.broadcast %cst_13 : f32 to vector<8x784xf32>
    %21 = arith.addf %19, %20 : vector<8x784xf32>
    %c0_14 = arith.constant 0 : index
    %c0_15 = arith.constant 0 : index
    %22 = vector.load %arg6[%c0_14, %c0_15] : memref<8x784xf32, #tpu.memory_space<vmem>>, vector<8x784xf32>
    tpu.vector_store %arg6[%c0_14, %c0_15], %21 {strides = array<i32>} : memref<8x784xf32, #tpu.memory_space<vmem>>, vector<8x784xf32>,
    return
  }
  func.func @transform_0(%arg0: i32) -> (i32, i32) {
    %c0_i32 = arith.constant 0 : i32
    %c0_i32_0 = arith.constant 0 : i32
    return %arg0, %c0_i32 : i32, i32
  }
  func.func @transform_1(%arg0: i32) -> (i32, i32) {
    %c0_i32 = arith.constant 0 : i32
    %c0_i32_0 = arith.constant 0 : i32
    %c0_i32_1 = arith.constant 0 : i32
    return %c0_i32, %c0_i32_0 : i32, i32
  }
  func.func @transform_2(%arg0: i32) -> (i32, i32) {
    %c0_i32 = arith.constant 0 : i32
    %c0_i32_0 = arith.constant 0 : i32
    %c0_i32_1 = arith.constant 0 : i32
    return %c0_i32, %c0_i32_0 : i32, i32
  }
  func.func @transform_3(%arg0: i32) -> (i32, i32) {
    %c0_i32 = arith.constant 0 : i32
    %c0_i32_0 = arith.constant 0 : i32
    %c0_i32_1 = arith.constant 0 : i32
    return %c0_i32, %c0_i32_0 : i32, i32
  }
  func.func @transform_4(%arg0: i32) -> (i32, i32) {
    %c0_i32 = arith.constant 0 : i32
    %c0_i32_0 = arith.constant 0 : i32
    %c0_i32_1 = arith.constant 0 : i32
    return %c0_i32, %c0_i32_0 : i32, i32
  }
  func.func @transform_5(%arg0: i32) -> (i32, i32) {
    %c0_i32 = arith.constant 0 : i32
    %c0_i32_0 = arith.constant 0 : i32
    return %arg0, %c0_i32 : i32, i32
  }
}

</mosaic_0001>

<llo_original>
// kernel: tpu_custom_call.1
$region0: #{tpu_custom_call.1}
  #allocation0 [shape = 'u32[]', space=smem, size = 0x4, offset = 0x4, fixed_abs, tag = 'smem constant byte address 0x4 - core index']
  #allocation1 [shape = 'u32[72,128]{1,0:T(1,128)}', space=vmem, size = 0x9000, scoped, tag = 'internal scratch']
  %s0 = inlined_call_operand.vmem [shape: f32[8,100], index: 0, kind: input, shape index: {}]
  %s1 = inlined_call_operand.vmem [shape: bf16[100,256], index: 1, kind: input, shape index: {}]
  %s2 = inlined_call_operand.vmem [shape: f32[1,256], index: 2, kind: input, shape index: {}]
  %s3 = inlined_call_operand.vmem [shape: bf16[256,784], index: 3, kind: input, shape index: {}]
  %s4 = inlined_call_operand.vmem [shape: f32[1,784], index: 4, kind: input, shape index: {}]
  %s5 = inlined_call_operand.hbm [shape: f32[8,784], index: 5, kind: output, shape index: {}]
  %s6 = sld [smem:[#allocation0]]
  $region30: #{tpu_custom_call.1} parent=0
    _
  %s8 = ssub.s32 1, %s6
  %s9 = scalar_select 0, %s8, %s6
  $region1: #{tpu_custom_call.1} parent=0
    #allocation2 [shape = 'u8[28672]{0}', space=vmem, size = 0x7000, scoped, tag = 'output window, operand 0, single buffered']
    #allocation3 [shape = 's32[1]{0}', space=sflag, size = 0x4, scoped, tag = 'scoped memory for tpu_custom_call.1']
    %10 = vsyncpa [#allocation3], 0
    // Predicated region
    $region2: #{tpu_custom_call.1} parent=1 // pred_check
      _
    $region3: #{tpu_custom_call.1} parent=1 // pred_check_branch
      %12 = sbr.rel (0) target = $region5
    $region4: #{tpu_custom_call.1} parent=1 // pred_region
      _
    $region5: #{tpu_custom_call.1} parent=1 // pred_fallthru
      _
    // Predicated region
    $region6: #{tpu_custom_call.1} parent=1 // pred_check
      _
    $region7: #{tpu_custom_call.1} parent=1 // pred_check_branch
      %14 = sbr.rel (0) target = $region9
    $region8: #{tpu_custom_call.1} parent=1 // pred_region
      _
    $region9: #{tpu_custom_call.1} parent=1 // pred_fallthru
      _
    // Predicated region
    $region10: #{tpu_custom_call.1} parent=1 // pred_check
      _
    $region11: #{tpu_custom_call.1} parent=1 // pred_check_branch
      %16 = sbr.rel (0) target = $region13
    $region12: #{tpu_custom_call.1} parent=1 // pred_region
      _
    $region13: #{tpu_custom_call.1} parent=1 // pred_fallthru
      _
    // Predicated region
    $region14: #{tpu_custom_call.1} parent=1 // pred_check
      _
    $region15: #{tpu_custom_call.1} parent=1 // pred_check_branch
      %18 = sbr.rel (0) target = $region17
    $region16: #{tpu_custom_call.1} parent=1 // pred_region
      _
    $region17: #{tpu_custom_call.1} parent=1 // pred_fallthru
      _
    // Predicated region
    $region18: #{tpu_custom_call.1} parent=1 // pred_check
      _
    $region19: #{tpu_custom_call.1} parent=1 // pred_check_branch
      %20 = sbr.rel (0) target = $region21
    $region20: #{tpu_custom_call.1} parent=1 // pred_region
      _
    $region21: #{tpu_custom_call.1} parent=1 // pred_fallthru
      _
    %v22 = vld [vmem:[%s0] sm:$0xff]
    %v23 = vpack.c.bf16 %v22, %v22
    %v24 = vld [vmem:[%s1] sm:$0xff]
    %v25 = vld [vmem:[%s1 + $0x8] sm:$0xff]
    %v26 = vld [vmem:[%s1 + $0x10] sm:$0xff]
    %v27 = vld [vmem:[%s1 + $0x18] sm:$0xff]
    %v28 = vld [vmem:[%s1 + $0x20] sm:$0xff]
    %v29 = vld [vmem:[%s1 + $0x28] sm:$0xff]
    %v30 = vld [vmem:[%s1 + $0x30] sm:$0xff]
    %v31 = vld [vmem:[%s1 + $0x38] sm:$0xff]
    %v32 = vld [vmem:[%s1 + $0x40] sm:$0xff]
    %v33 = vld [vmem:[%s1 + $0x48] sm:$0xff]
    %v34 = vld [vmem:[%s1 + $0x50] sm:$0xff]
    %v35 = vld [vmem:[%s1 + $0x58] sm:$0xff]
    %v36 = vld [vmem:[%s1 + $0x60] sm:$0x33]
    %v37 = vld [vmem:[%s2] sm:$0x3]
    %v39 = vperm.slane %v37, 0
    %v40 = vperm.slane %v37, 1
    %v56 = vunpack.c.l.b16 %v24
    %v57 = vunpack.c.h.b16 %v24
    %v58 = vunpack.c.l.b16 %v25
    %v59 = vunpack.c.h.b16 %v25
    %v60 = vunpack.c.l.b16 %v26
    %v61 = vunpack.c.h.b16 %v26
    %v62 = vunpack.c.l.b16 %v27
    %v63 = vunpack.c.h.b16 %v27
    %v64 = vunpack.c.l.b16 %v28
    %v65 = vunpack.c.h.b16 %v28
    %v66 = vunpack.c.l.b16 %v29
    %v67 = vunpack.c.h.b16 %v29
    %v68 = vunpack.c.l.b16 %v30
    %v69 = vunpack.c.h.b16 %v30
    %v70 = vunpack.c.l.b16 %v31
    %v71 = vunpack.c.h.b16 %v31
    %v72 = vunpack.c.l.b16 %v32
    %v73 = vunpack.c.h.b16 %v32
    %v74 = vunpack.c.l.b16 %v33
    %v75 = vunpack.c.h.b16 %v33
    %v76 = vunpack.c.l.b16 %v34
    %v77 = vunpack.c.h.b16 %v34
    %v78 = vunpack.c.l.b16 %v35
    %v79 = vunpack.c.h.b16 %v35
    %v80 = vunpack.c.l.b16 %v36
    %v81 = vunpack.c.h.b16 %v36
    %v82 = vpack.c.b16 %v58, %v56
    %v83 = vpack.c.b16 %v59, %v57
    %v84 = vpack.c.b16 %v62, %v60
    %v85 = vpack.c.b16 %v63, %v61
    %v86 = vpack.c.b16 %v66, %v64
    %v87 = vpack.c.b16 %v67, %v65
    %v88 = vpack.c.b16 %v70, %v68
    %v89 = vpack.c.b16 %v71, %v69
    %v90 = vpack.c.b16 %v74, %v72
    %v91 = vpack.c.b16 %v75, %v73
    %v92 = vpack.c.b16 %v78, %v76
    %v93 = vpack.c.b16 %v79, %v77
    %v94 = vpack.c.b16 %v80, %v80
    %v95 = vpack.c.b16 %v81, %v81
    %vm108 = vcmask 818176
    %v110 = vsel %vm108, %v23, 0
    %vm112 = vcmask 1041408
    %v114 = vsel %vm112, %v94, 0
    %v117 = vsel %vm112, %v95, 0
    %119 = vmatpush.bf16.msra.mxu0 0
    %120 = vmatpush.bf16.msra.mxu0 %v114
    %121 = vmatpush.bf16.msra.mxu0 %v92
    %122 = vmatpush.bf16.msra.mxu0 %v90
    %123 = vmatpush.bf16.msra.mxu0 %v88
    %124 = vmatpush.bf16.msra.mxu0 %v86
    %125 = vmatpush.bf16.msra.mxu0 %v84
    %126 = vmatpush.bf16.msra.mxu0 %v82
    %127 = vmatmul.bf16.gmra.mxu0 %v110
    %v128 = vpop.f32.mrf.mxu0
    %v129 = vadd.f32 %v39, %v128
    %v130 = vpop.f32.mrf.mxu0
    %131 = vdwg.mxu0
    %132 = vmatpush.bf16.msra.mxu0 0
    %133 = vmatpush.bf16.msra.mxu0 %v117
    %134 = vmatpush.bf16.msra.mxu0 %v93
    %135 = vmatpush.bf16.msra.mxu0 %v91
    %136 = vmatpush.bf16.msra.mxu0 %v89
    %137 = vmatpush.bf16.msra.mxu0 %v87
    %138 = vmatpush.bf16.msra.mxu0 %v85
    %139 = vmatpush.bf16.msra.mxu0 %v83
    %140 = vmatmul.bf16.gmra.mxu0 %v110
    %v141 = vpop.f32.mrf.mxu0
    %v142 = vadd.f32 %v40, %v141
    %v143 = vpop.f32.mrf.mxu0
    %144 = vdwg.mxu0
    %v145 = vmax.f32 %v129, 0.0
    %v146 = vmax.f32 %v142, 0.0
    %v147 = vpack.c.bf16 %v145, %v145
    %v148 = vpack.c.bf16 %v146, %v146
    %v149 = vld [vmem:[%s3] sm:$0xff]
    %v150 = vld [vmem:[%s3 + $0x8] sm:$0xff]
    %v151 = vld [vmem:[%s3 + $0x10] sm:$0xff]
    %v152 = vld [vmem:[%s3 + $0x18] sm:$0xf]
    %v153 = vld [vmem:[%s3 + $0x1c] sm:$0xff]
    %v154 = vld [vmem:[%s3 + $0x24] sm:$0xff]
    %v155 = vld [vmem:[%s3 + $0x2c] sm:$0xff]
    %v156 = vld [vmem:[%s3 + $0x34] sm:$0xf]
    %v157 = vld [vmem:[%s3 + $0x38] sm:$0xff]
    %v158 = vld [vmem:[%s3 + $0x40] sm:$0xff]
    %v159 = vld [vmem:[%s3 + $0x48] sm:$0xff]
    %v160 = vld [vmem:[%s3 + $0x50] sm:$0xf]
    %v161 = vld [vmem:[%s3 + $0x54] sm:$0xff]
    %v162 = vld [vmem:[%s3 + $0x5c] sm:$0xff]
    %v163 = vld [vmem:[%s3 + $0x64] sm:$0xff]
    %v164 = vld [vmem:[%s3 + $0x6c] sm:$0xf]
    %v165 = vld [vmem:[%s3 + $0x70] sm:$0xff]
    %v166 = vld [vmem:[%s3 + $0x78] sm:$0xff]
    %v167 = vld [vmem:[%s3 + $0x80] sm:$0xff]
    %v168 = vld [vmem:[%s3 + $0x88] sm:$0xf]
    %v169 = vld [vmem:[%s3 + $0x8c] sm:$0xff]
    %v170 = vld [vmem:[%s3 + $0x94] sm:$0xff]
    %v171 = vld [vmem:[%s3 + $0x9c] sm:$0xff]
    %v172 = vld [vmem:[%s3 + $0xa4] sm:$0xf]
    %v173 = vld [vmem:[%s3 + $0xa8] sm:$0xff]
    %v174 = vld [vmem:[%s3 + $0xb0] sm:$0xff]
    %v175 = vld [vmem:[%s3 + $0xb8] sm:$0xff]
    %v176 = vld [vmem:[%s3 + $0xc0] sm:$0xf]
    %v177 = vld [vmem:[%s3 + $0xc4] sm:$0xff]
    %v178 = vld [vmem:[%s3 + $0xcc] sm:$0xff]
    %v179 = vld [vmem:[%s3 + $0xd4] sm:$0xff]
    %v180 = vld [vmem:[%s3 + $0xdc] sm:$0xf]
    %v181 = vld [vmem:[%s3 + $0xe0] sm:$0xff]
    %v182 = vld [vmem:[%s3 + $0xe8] sm:$0xff]
    %v183 = vld [vmem:[%s3 + $0xf0] sm:$0xff]
    %v184 = vld [vmem:[%s3 + $0xf8] sm:$0xf]
    %v185 = vld [vmem:[%s3 + $0xfc] sm:$0xff]
    %v186 = vld [vmem:[%s3 + $0x104] sm:$0xff]
    %v187 = vld [vmem:[%s3 + $0x10c] sm:$0xff]
    %v188 = vld [vmem:[%s3 + $0x114] sm:$0xf]
    %v189 = vld [vmem:[%s3 + $0x118] sm:$0xff]
    %v190 = vld [vmem:[%s3 + $0x120] sm:$0xff]
    %v191 = vld [vmem:[%s3 + $0x128] sm:$0xff]
    %v192 = vld [vmem:[%s3 + $0x130] sm:$0xf]
    %v193 = vld [vmem:[%s3 + $0x134] sm:$0xff]
    %v194 = vld [vmem:[%s3 + $0x13c] sm:$0xff]
    %v195 = vld [vmem:[%s3 + $0x144] sm:$0xff]
    %v196 = vld [vmem:[%s3 + $0x14c] sm:$0xf]
    %v197 = vld [vmem:[%s3 + $0x150] sm:$0xff]
    %v198 = vld [vmem:[%s3 + $0x158] sm:$0xff]
    %v199 = vld [vmem:[%s3 + $0x160] sm:$0xff]
    %v200 = vld [vmem:[%s3 + $0x168] sm:$0xf]
    %v201 = vld [vmem:[%s3 + $0x16c] sm:$0xff]
    %v202 = vld [vmem:[%s3 + $0x174] sm:$0xff]
    %v203 = vld [vmem:[%s3 + $0x17c] sm:$0xff]
    %v204 = vld [vmem:[%s3 + $0x184] sm:$0xf]
    %v205 = vld [vmem:[%s3 + $0x188] sm:$0xff]
    %v206 = vld [vmem:[%s3 + $0x190] sm:$0xff]
    %v207 = vld [vmem:[%s3 + $0x198] sm:$0xff]
    %v208 = vld [vmem:[%s3 + $0x1a0] sm:$0xf]
    %v209 = vld [vmem:[%s3 + $0x1a4] sm:$0xff]
    %v210 = vld [vmem:[%s3 + $0x1ac] sm:$0xff]
    %v211 = vld [vmem:[%s3 + $0x1b4] sm:$0xff]
    %v212 = vld [vmem:[%s3 + $0x1bc] sm:$0xf]
    %v213 = vld [vmem:[%s3 + $0x1c0] sm:$0xff]
    %v214 = vld [vmem:[%s3 + $0x1c8] sm:$0xff]
    %v215 = vld [vmem:[%s3 + $0x1d0] sm:$0xff]
    %v216 = vld [vmem:[%s3 + $0x1d8] sm:$0xf]
    %v217 = vld [vmem:[%s3 + $0x1dc] sm:$0xff]
    %v218 = vld [vmem:[%s3 + $0x1e4] sm:$0xff]
    %v219 = vld [vmem:[%s3 + $0x1ec] sm:$0xff]
    %v220 = vld [vmem:[%s3 + $0x1f4] sm:$0xf]
    %v221 = vld [vmem:[%s3 + $0x1f8] sm:$0xff]
    %v222 = vld [vmem:[%s3 + $0x200] sm:$0xff]
    %v223 = vld [vmem:[%s3 + $0x208] sm:$0xff]
    %v224 = vld [vmem:[%s3 + $0x210] sm:$0xf]
    %v225 = vld [vmem:[%s3 + $0x214] sm:$0xff]
    %v226 = vld [vmem:[%s3 + $0x21c] sm:$0xff]
    %v227 = vld [vmem:[%s3 + $0x224] sm:$0xff]
    %v228 = vld [vmem:[%s3 + $0x22c] sm:$0xf]
    %v229 = vld [vmem:[%s3 + $0x230] sm:$0xff]
    %v230 = vld [vmem:[%s3 + $0x238] sm:$0xff]
    %v231 = vld [vmem:[%s3 + $0x240] sm:$0xff]
    %v232 = vld [vmem:[%s3 + $0x248] sm:$0xf]
    %v233 = vld [vmem:[%s3 + $0x24c] sm:$0xff]
    %v234 = vld [vmem:[%s3 + $0x254] sm:$0xff]
    %v235 = vld [vmem:[%s3 + $0x25c] sm:$0xff]
    %v236 = vld [vmem:[%s3 + $0x264] sm:$0xf]
    %v237 = vld [vmem:[%s3 + $0x268] sm:$0xff]
    %v238 = vld [vmem:[%s3 + $0x270] sm:$0xff]
    %v239 = vld [vmem:[%s3 + $0x278] sm:$0xff]
    %v240 = vld [vmem:[%s3 + $0x280] sm:$0xf]
    %v241 = vld [vmem:[%s3 + $0x284] sm:$0xff]
    %v242 = vld [vmem:[%s3 + $0x28c] sm:$0xff]
    %v243 = vld [vmem:[%s3 + $0x294] sm:$0xff]
    %v244 = vld [vmem:[%s3 + $0x29c] sm:$0xf]
    %v245 = vld [vmem:[%s3 + $0x2a0] sm:$0xff]
    %v246 = vld [vmem:[%s3 + $0x2a8] sm:$0xff]
    %v247 = vld [vmem:[%s3 + $0x2b0] sm:$0xff]
    %v248 = vld [vmem:[%s3 + $0x2b8] sm:$0xf]
    %v249 = vld [vmem:[%s3 + $0x2bc] sm:$0xff]
    %v250 = vld [vmem:[%s3 + $0x2c4] sm:$0xff]
    %v251 = vld [vmem:[%s3 + $0x2cc] sm:$0xff]
    %v252 = vld [vmem:[%s3 + $0x2d4] sm:$0xf]
    %v253 = vld [vmem:[%s3 + $0x2d8] sm:$0xff]
    %v254 = vld [vmem:[%s3 + $0x2e0] sm:$0xff]
    %v255 = vld [vmem:[%s3 + $0x2e8] sm:$0xff]
    %v256 = vld [vmem:[%s3 + $0x2f0] sm:$0xf]
    %v257 = vld [vmem:[%s3 + $0x2f4] sm:$0xff]
    %v258 = vld [vmem:[%s3 + $0x2fc] sm:$0xff]
    %v259 = vld [vmem:[%s3 + $0x304] sm:$0xff]
    %v260 = vld [vmem:[%s3 + $0x30c] sm:$0xf]
    %v261 = vld [vmem:[%s3 + $0x310] sm:$0xff]
    %v262 = vld [vmem:[%s3 + $0x318] sm:$0xff]
    %v263 = vld [vmem:[%s3 + $0x320] sm:$0xff]
    %v264 = vld [vmem:[%s3 + $0x328] sm:$0xf]
    %v265 = vld [vmem:[%s3 + $0x32c] sm:$0xff]
    %v266 = vld [vmem:[%s3 + $0x334] sm:$0xff]
    %v267 = vld [vmem:[%s3 + $0x33c] sm:$0xff]
    %v268 = vld [vmem:[%s3 + $0x344] sm:$0xf]
    %v269 = vld [vmem:[%s3 + $0x348] sm:$0xff]
    %v270 = vld [vmem:[%s3 + $0x350] sm:$0xff]
    %v271 = vld [vmem:[%s3 + $0x358] sm:$0xff]
    %v272 = vld [vmem:[%s3 + $0x360] sm:$0xf]
    %v273 = vld [vmem:[%s3 + $0x364] sm:$0xff]
    %v274 = vld [vmem:[%s3 + $0x36c] sm:$0xff]
    %v275 = vld [vmem:[%s3 + $0x374] sm:$0xff]
    %v276 = vld [vmem:[%s3 + $0x37c] sm:$0xf]
    %v277 = vld [vmem:[%s4] sm:$0x7f]
    %v279 = vperm.slane %v277, 0
    %v280 = vperm.slane %v277, 1
    %v281 = vperm.slane %v277, 2
    %v282 = vperm.slane %v277, 3
    %v283 = vperm.slane %v277, 4
    %v284 = vperm.slane %v277, 5
    %v285 = vperm.slane %v277, 6
    %v421 = vunpack.c.l.b16 %v149
    %v422 = vunpack.c.h.b16 %v149
    %v423 = vunpack.c.l.b16 %v150
    %v424 = vunpack.c.h.b16 %v150
    %v425 = vunpack.c.l.b16 %v151
    %v426 = vunpack.c.h.b16 %v151
    %v427 = vunpack.c.l.b16 %v152
    %v428 = vunpack.c.l.b16 %v153
    %v429 = vunpack.c.h.b16 %v153
    %v430 = vunpack.c.l.b16 %v154
    %v431 = vunpack.c.h.b16 %v154
    %v432 = vunpack.c.l.b16 %v155
    %v433 = vunpack.c.h.b16 %v155
    %v434 = vunpack.c.l.b16 %v156
    %v435 = vunpack.c.l.b16 %v157
    %v436 = vunpack.c.h.b16 %v157
    %v437 = vunpack.c.l.b16 %v158
    %v438 = vunpack.c.h.b16 %v158
    %v439 = vunpack.c.l.b16 %v159
    %v440 = vunpack.c.h.b16 %v159
    %v441 = vunpack.c.l.b16 %v160
    %v442 = vunpack.c.l.b16 %v161
    %v443 = vunpack.c.h.b16 %v161
    %v444 = vunpack.c.l.b16 %v162
    %v445 = vunpack.c.h.b16 %v162
    %v446 = vunpack.c.l.b16 %v163
    %v447 = vunpack.c.h.b16 %v163
    %v448 = vunpack.c.l.b16 %v164
    %v449 = vunpack.c.l.b16 %v165
    %v450 = vunpack.c.h.b16 %v165
    %v451 = vunpack.c.l.b16 %v166
    %v452 = vunpack.c.h.b16 %v166
    %v453 = vunpack.c.l.b16 %v167
    %v454 = vunpack.c.h.b16 %v167
    %v455 = vunpack.c.l.b16 %v168
    %v456 = vunpack.c.l.b16 %v169
    %v457 = vunpack.c.h.b16 %v169
    %v458 = vunpack.c.l.b16 %v170
    %v459 = vunpack.c.h.b16 %v170
    %v460 = vunpack.c.l.b16 %v171
    %v461 = vunpack.c.h.b16 %v171
    %v462 = vunpack.c.l.b16 %v172
    %v463 = vunpack.c.l.b16 %v173
    %v464 = vunpack.c.h.b16 %v173
    %v465 = vunpack.c.l.b16 %v174
    %v466 = vunpack.c.h.b16 %v174
    %v467 = vunpack.c.l.b16 %v175
    %v468 = vunpack.c.h.b16 %v175
    %v469 = vunpack.c.l.b16 %v176
    %v470 = vunpack.c.l.b16 %v177
    %v471 = vunpack.c.h.b16 %v177
    %v472 = vunpack.c.l.b16 %v178
    %v473 = vunpack.c.h.b16 %v178
    %v474 = vunpack.c.l.b16 %v179
    %v475 = vunpack.c.h.b16 %v179
    %v476 = vunpack.c.l.b16 %v180
    %v477 = vunpack.c.l.b16 %v181
    %v478 = vunpack.c.h.b16 %v181
    %v479 = vunpack.c.l.b16 %v182
    %v480 = vunpack.c.h.b16 %v182
    %v481 = vunpack.c.l.b16 %v183
    %v482 = vunpack.c.h.b16 %v183
    %v483 = vunpack.c.l.b16 %v184
    %v484 = vunpack.c.l.b16 %v185
    %v485 = vunpack.c.h.b16 %v185
    %v486 = vunpack.c.l.b16 %v186
    %v487 = vunpack.c.h.b16 %v186
    %v488 = vunpack.c.l.b16 %v187
    %v489 = vunpack.c.h.b16 %v187
    %v490 = vunpack.c.l.b16 %v188
    %v491 = vunpack.c.l.b16 %v189
    %v492 = vunpack.c.h.b16 %v189
    %v493 = vunpack.c.l.b16 %v190
    %v494 = vunpack.c.h.b16 %v190
    %v495 = vunpack.c.l.b16 %v191
    %v496 = vunpack.c.h.b16 %v191
    %v497 = vunpack.c.l.b16 %v192
    %v498 = vunpack.c.l.b16 %v193
    %v499 = vunpack.c.h.b16 %v193
    %v500 = vunpack.c.l.b16 %v194
    %v501 = vunpack.c.h.b16 %v194
    %v502 = vunpack.c.l.b16 %v195
    %v503 = vunpack.c.h.b16 %v195
    %v504 = vunpack.c.l.b16 %v196
    %v505 = vunpack.c.l.b16 %v197
    %v506 = vunpack.c.h.b16 %v197
    %v507 = vunpack.c.l.b16 %v198
    %v508 = vunpack.c.h.b16 %v198
    %v509 = vunpack.c.l.b16 %v199
    %v510 = vunpack.c.h.b16 %v199
    %v511 = vunpack.c.l.b16 %v200
    %v512 = vunpack.c.l.b16 %v201
    %v513 = vunpack.c.h.b16 %v201
    %v514 = vunpack.c.l.b16 %v202
    %v515 = vunpack.c.h.b16 %v202
    %v516 = vunpack.c.l.b16 %v203
    %v517 = vunpack.c.h.b16 %v203
    %v518 = vunpack.c.l.b16 %v204
    %v519 = vunpack.c.l.b16 %v205
    %v520 = vunpack.c.h.b16 %v205
    %v521 = vunpack.c.l.b16 %v206
    %v522 = vunpack.c.h.b16 %v206
    %v523 = vunpack.c.l.b16 %v207
    %v524 = vunpack.c.h.b16 %v207
    %v525 = vunpack.c.l.b16 %v208
    %v526 = vunpack.c.l.b16 %v209
    %v527 = vunpack.c.h.b16 %v209
    %v528 = vunpack.c.l.b16 %v210
    %v529 = vunpack.c.h.b16 %v210
    %v530 = vunpack.c.l.b16 %v211
    %v531 = vunpack.c.h.b16 %v211
    %v532 = vunpack.c.l.b16 %v212
    %v533 = vunpack.c.l.b16 %v213
    %v534 = vunpack.c.h.b16 %v213
    %v535 = vunpack.c.l.b16 %v214
    %v536 = vunpack.c.h.b16 %v214
    %v537 = vunpack.c.l.b16 %v215
    %v538 = vunpack.c.h.b16 %v215
    %v539 = vunpack.c.l.b16 %v216
    %v540 = vunpack.c.l.b16 %v217
    %v541 = vunpack.c.h.b16 %v217
    %v542 = vunpack.c.l.b16 %v218
    %v543 = vunpack.c.h.b16 %v218
    %v544 = vunpack.c.l.b16 %v219
    %v545 = vunpack.c.h.b16 %v219
    %v546 = vunpack.c.l.b16 %v220
    %v547 = vunpack.c.l.b16 %v221
    %v548 = vunpack.c.h.b16 %v221
    %v549 = vunpack.c.l.b16 %v222
    %v550 = vunpack.c.h.b16 %v222
    %v551 = vunpack.c.l.b16 %v223
    %v552 = vunpack.c.h.b16 %v223
    %v553 = vunpack.c.l.b16 %v224
    %v554 = vunpack.c.l.b16 %v225
    %v555 = vunpack.c.h.b16 %v225
    %v556 = vunpack.c.l.b16 %v226
    %v557 = vunpack.c.h.b16 %v226
    %v558 = vunpack.c.l.b16 %v227
    %v559 = vunpack.c.h.b16 %v227
    %v560 = vunpack.c.l.b16 %v228
    %v561 = vunpack.c.l.b16 %v229
    %v562 = vunpack.c.h.b16 %v229
    %v563 = vunpack.c.l.b16 %v230
    %v564 = vunpack.c.h.b16 %v230
    %v565 = vunpack.c.l.b16 %v231
    %v566 = vunpack.c.h.b16 %v231
    %v567 = vunpack.c.l.b16 %v232
    %v568 = vunpack.c.l.b16 %v233
    %v569 = vunpack.c.h.b16 %v233
    %v570 = vunpack.c.l.b16 %v234
    %v571 = vunpack.c.h.b16 %v234
    %v572 = vunpack.c.l.b16 %v235
    %v573 = vunpack.c.h.b16 %v235
    %v574 = vunpack.c.l.b16 %v236
    %v575 = vunpack.c.l.b16 %v237
    %v576 = vunpack.c.h.b16 %v237
    %v577 = vunpack.c.l.b16 %v238
    %v578 = vunpack.c.h.b16 %v238
    %v579 = vunpack.c.l.b16 %v239
    %v580 = vunpack.c.h.b16 %v239
    %v581 = vunpack.c.l.b16 %v240
    %v582 = vunpack.c.l.b16 %v241
    %v583 = vunpack.c.h.b16 %v241
    %v584 = vunpack.c.l.b16 %v242
    %v585 = vunpack.c.h.b16 %v242
    %v586 = vunpack.c.l.b16 %v243
    %v587 = vunpack.c.h.b16 %v243
    %v588 = vunpack.c.l.b16 %v244
    %v589 = vunpack.c.l.b16 %v245
    %v590 = vunpack.c.h.b16 %v245
    %v591 = vunpack.c.l.b16 %v246
    %v592 = vunpack.c.h.b16 %v246
    %v593 = vunpack.c.l.b16 %v247
    %v594 = vunpack.c.h.b16 %v247
    %v595 = vunpack.c.l.b16 %v248
    %v596 = vunpack.c.l.b16 %v249
    %v597 = vunpack.c.h.b16 %v249
    %v598 = vunpack.c.l.b16 %v250
    %v599 = vunpack.c.h.b16 %v250
    %v600 = vunpack.c.l.b16 %v251
    %v601 = vunpack.c.h.b16 %v251
    %v602 = vunpack.c.l.b16 %v252
    %v603 = vunpack.c.l.b16 %v253
    %v604 = vunpack.c.h.b16 %v253
    %v605 = vunpack.c.l.b16 %v254
    %v606 = vunpack.c.h.b16 %v254
    %v607 = vunpack.c.l.b16 %v255
    %v608 = vunpack.c.h.b16 %v255
    %v609 = vunpack.c.l.b16 %v256
    %v610 = vunpack.c.l.b16 %v257
    %v611 = vunpack.c.h.b16 %v257
    %v612 = vunpack.c.l.b16 %v258
    %v613 = vunpack.c.h.b16 %v258
    %v614 = vunpack.c.l.b16 %v259
    %v615 = vunpack.c.h.b16 %v259
    %v616 = vunpack.c.l.b16 %v260
    %v617 = vunpack.c.l.b16 %v261
    %v618 = vunpack.c.h.b16 %v261
    %v619 = vunpack.c.l.b16 %v262
    %v620 = vunpack.c.h.b16 %v262
    %v621 = vunpack.c.l.b16 %v263
    %v622 = vunpack.c.h.b16 %v263
    %v623 = vunpack.c.l.b16 %v264
    %v624 = vunpack.c.l.b16 %v265
    %v625 = vunpack.c.h.b16 %v265
    %v626 = vunpack.c.l.b16 %v266
    %v627 = vunpack.c.h.b16 %v266
    %v628 = vunpack.c.l.b16 %v267
    %v629 = vunpack.c.h.b16 %v267
    %v630 = vunpack.c.l.b16 %v268
    %v631 = vunpack.c.l.b16 %v269
    %v632 = vunpack.c.h.b16 %v269
    %v633 = vunpack.c.l.b16 %v270
    %v634 = vunpack.c.h.b16 %v270
    %v635 = vunpack.c.l.b16 %v271
    %v636 = vunpack.c.h.b16 %v271
    %v637 = vunpack.c.l.b16 %v272
    %v638 = vunpack.c.l.b16 %v273
    %v639 = vunpack.c.h.b16 %v273
    %v640 = vunpack.c.l.b16 %v274
    %v641 = vunpack.c.h.b16 %v274
    %v642 = vunpack.c.l.b16 %v275
    %v643 = vunpack.c.h.b16 %v275
    %v644 = vunpack.c.l.b16 %v276
    %v645 = vpack.c.b16 %v428, %v421
    %v646 = vpack.c.b16 %v429, %v422
    %v647 = vpack.c.b16 %v430, %v423
    %v648 = vpack.c.b16 %v431, %v424
    %v649 = vpack.c.b16 %v432, %v425
    %v650 = vpack.c.b16 %v433, %v426
    %v651 = vpack.c.b16 %v434, %v427
    %v652 = vpack.c.b16 %v442, %v435
    %v653 = vpack.c.b16 %v443, %v436
    %v654 = vpack.c.b16 %v444, %v437
    %v655 = vpack.c.b16 %v445, %v438
    %v656 = vpack.c.b16 %v446, %v439
    %v657 = vpack.c.b16 %v447, %v440
    %v658 = vpack.c.b16 %v448, %v441
    %v659 = vpack.c.b16 %v456, %v449
    %v660 = vpack.c.b16 %v457, %v450
    %v661 = vpack.c.b16 %v458, %v451
    %v662 = vpack.c.b16 %v459, %v452
    %v663 = vpack.c.b16 %v460, %v453
    %v664 = vpack.c.b16 %v461, %v454
    %v665 = vpack.c.b16 %v462, %v455
    %v666 = vpack.c.b16 %v470, %v463
    %v667 = vpack.c.b16 %v471, %v464
    %v668 = vpack.c.b16 %v472, %v465
    %v669 = vpack.c.b16 %v473, %v466
    %v670 = vpack.c.b16 %v474, %v467
    %v671 = vpack.c.b16 %v475, %v468
    %v672 = vpack.c.b16 %v476, %v469
    %v673 = vpack.c.b16 %v484, %v477
    %v674 = vpack.c.b16 %v485, %v478
    %v675 = vpack.c.b16 %v486, %v479
    %v676 = vpack.c.b16 %v487, %v480
    %v677 = vpack.c.b16 %v488, %v481
    %v678 = vpack.c.b16 %v489, %v482
    %v679 = vpack.c.b16 %v490, %v483
    %v680 = vpack.c.b16 %v498, %v491
    %v681 = vpack.c.b16 %v499, %v492
    %v682 = vpack.c.b16 %v500, %v493
    %v683 = vpack.c.b16 %v501, %v494
    %v684 = vpack.c.b16 %v502, %v495
    %v685 = vpack.c.b16 %v503, %v496
    %v686 = vpack.c.b16 %v504, %v497
    %v687 = vpack.c.b16 %v512, %v505
    %v688 = vpack.c.b16 %v513, %v506
    %v689 = vpack.c.b16 %v514, %v507
    %v690 = vpack.c.b16 %v515, %v508
    %v691 = vpack.c.b16 %v516, %v509
    %v692 = vpack.c.b16 %v517, %v510
    %v693 = vpack.c.b16 %v518, %v511
    %v694 = vpack.c.b16 %v526, %v519
    %v695 = vpack.c.b16 %v527, %v520
    %v696 = vpack.c.b16 %v528, %v521
    %v697 = vpack.c.b16 %v529, %v522
    %v698 = vpack.c.b16 %v530, %v523
    %v699 = vpack.c.b16 %v531, %v524
    %v700 = vpack.c.b16 %v532, %v525
    %v701 = vpack.c.b16 %v540, %v533
    %v702 = vpack.c.b16 %v541, %v534
    %v703 = vpack.c.b16 %v542, %v535
    %v704 = vpack.c.b16 %v543, %v536
    %v705 = vpack.c.b16 %v544, %v537
    %v706 = vpack.c.b16 %v545, %v538
    %v707 = vpack.c.b16 %v546, %v539
    %v708 = vpack.c.b16 %v554, %v547
    %v709 = vpack.c.b16 %v555, %v548
    %v710 = vpack.c.b16 %v556, %v549
    %v711 = vpack.c.b16 %v557, %v550
    %v712 = vpack.c.b16 %v558, %v551
    %v713 = vpack.c.b16 %v559, %v552
    %v714 = vpack.c.b16 %v560, %v553
    %v715 = vpack.c.b16 %v568, %v561
    %v716 = vpack.c.b16 %v569, %v562
    %v717 = vpack.c.b16 %v570, %v563
    %v718 = vpack.c.b16 %v571, %v564
    %v719 = vpack.c.b16 %v572, %v565
    %v720 = vpack.c.b16 %v573, %v566
    %v721 = vpack.c.b16 %v574, %v567
    %v722 = vpack.c.b16 %v582, %v575
    %v723 = vpack.c.b16 %v583, %v576
    %v724 = vpack.c.b16 %v584, %v577
    %v725 = vpack.c.b16 %v585, %v578
    %v726 = vpack.c.b16 %v586, %v579
    %v727 = vpack.c.b16 %v587, %v580
    %v728 = vpack.c.b16 %v588, %v581
    %v729 = vpack.c.b16 %v596, %v589
    %v730 = vpack.c.b16 %v597, %v590
    %v731 = vpack.c.b16 %v598, %v591
    %v732 = vpack.c.b16 %v599, %v592
    %v733 = vpack.c.b16 %v600, %v593
    %v734 = vpack.c.b16 %v601, %v594
    %v735 = vpack.c.b16 %v602, %v595
    %v736 = vpack.c.b16 %v610, %v603
    %v737 = vpack.c.b16 %v611, %v604
    %v738 = vpack.c.b16 %v612, %v605
    %v739 = vpack.c.b16 %v613, %v606
    %v740 = vpack.c.b16 %v614, %v607
    %v741 = vpack.c.b16 %v615, %v608
    %v742 = vpack.c.b16 %v616, %v609
    %v743 = vpack.c.b16 %v624, %v617
    %v744 = vpack.c.b16 %v625, %v618
    %v745 = vpack.c.b16 %v626, %v619
    %v746 = vpack.c.b16 %v627, %v620
    %v747 = vpack.c.b16 %v628, %v621
    %v748 = vpack.c.b16 %v629, %v622
    %v749 = vpack.c.b16 %v630, %v623
    %v750 = vpack.c.b16 %v638, %v631
    %v751 = vpack.c.b16 %v639, %v632
    %v752 = vpack.c.b16 %v640, %v633
    %v753 = vpack.c.b16 %v641, %v634
    %v754 = vpack.c.b16 %v642, %v635
    %v755 = vpack.c.b16 %v643, %v636
    %v756 = vpack.c.b16 %v644, %v637
    %869 = vmatpush.bf16.msra.mxu0 %v694
    %870 = vmatpush.bf16.msra.mxu0 %v687
    %871 = vmatpush.bf16.msra.mxu0 %v680
    %872 = vmatpush.bf16.msra.mxu0 %v673
    %873 = vmatpush.bf16.msra.mxu0 %v666
    %874 = vmatpush.bf16.msra.mxu0 %v659
    %875 = vmatpush.bf16.msra.mxu0 %v652
    %876 = vmatpush.bf16.msra.mxu0 %v645
    %877 = vmatmul.bf16.gmra.mxu0 %v147
    %v878 = vpop.f32.mrf.mxu0
    %v879 = vadd.f32 %v279, %v878
    %v880 = vpop.f32.mrf.mxu0
    %881 = vdwg.mxu0
    %882 = vmatpush.bf16.msra.mxu0 %v750
    %883 = vmatpush.bf16.msra.mxu0 %v743
    %884 = vmatpush.bf16.msra.mxu0 %v736
    %885 = vmatpush.bf16.msra.mxu0 %v729
    %886 = vmatpush.bf16.msra.mxu0 %v722
    %887 = vmatpush.bf16.msra.mxu0 %v715
    %888 = vmatpush.bf16.msra.mxu0 %v708
    %889 = vmatpush.bf16.msra.mxu0 %v701
    %890 = vmatmul.bf16.gmra.mxu0 %v148
    %v891 = vpop.f32.mrf.mxu0
    %v892 = vadd.f32 %v879, %v891
    %v893 = vpop.f32.mrf.mxu0
    %894 = vdwg.mxu0
    %895 = vmatpush.bf16.msra.mxu0 %v695
    %896 = vmatpush.bf16.msra.mxu0 %v688
    %897 = vmatpush.bf16.msra.mxu0 %v681
    %898 = vmatpush.bf16.msra.mxu0 %v674
    %899 = vmatpush.bf16.msra.mxu0 %v667
    %900 = vmatpush.bf16.msra.mxu0 %v660
    %901 = vmatpush.bf16.msra.mxu0 %v653
    %902 = vmatpush.bf16.msra.mxu0 %v646
    %903 = vmatmul.bf16.gmra.mxu0 %v147
    %v904 = vpop.f32.mrf.mxu0
    %v905 = vadd.f32 %v280, %v904
    %v906 = vpop.f32.mrf.mxu0
    %907 = vdwg.mxu0
    %908 = vmatpush.bf16.msra.mxu0 %v751
    %909 = vmatpush.bf16.msra.mxu0 %v744
    %910 = vmatpush.bf16.msra.mxu0 %v737
    %911 = vmatpush.bf16.msra.mxu0 %v730
    %912 = vmatpush.bf16.msra.mxu0 %v723
    %913 = vmatpush.bf16.msra.mxu0 %v716
    %914 = vmatpush.bf16.msra.mxu0 %v709
    %915 = vmatpush.bf16.msra.mxu0 %v702
    %916 = vmatmul.bf16.gmra.mxu0 %v148
    %v917 = vpop.f32.mrf.mxu0
    %v918 = vadd.f32 %v905, %v917
    %v919 = vpop.f32.mrf.mxu0
    %920 = vdwg.mxu0
    %921 = vmatpush.bf16.msra.mxu0 %v696
    %922 = vmatpush.bf16.msra.mxu0 %v689
    %923 = vmatpush.bf16.msra.mxu0 %v682
    %924 = vmatpush.bf16.msra.mxu0 %v675
    %925 = vmatpush.bf16.msra.mxu0 %v668
    %926 = vmatpush.bf16.msra.mxu0 %v661
    %927 = vmatpush.bf16.msra.mxu0 %v654
    %928 = vmatpush.bf16.msra.mxu0 %v647
    %929 = vmatmul.bf16.gmra.mxu0 %v147
    %v930 = vpop.f32.mrf.mxu0
    %v931 = vadd.f32 %v281, %v930
    %v932 = vpop.f32.mrf.mxu0
    %933 = vdwg.mxu0
    %934 = vmatpush.bf16.msra.mxu0 %v752
    %935 = vmatpush.bf16.msra.mxu0 %v745
    %936 = vmatpush.bf16.msra.mxu0 %v738
    %937 = vmatpush.bf16.msra.mxu0 %v731
    %938 = vmatpush.bf16.msra.mxu0 %v724
    %939 = vmatpush.bf16.msra.mxu0 %v717
    %940 = vmatpush.bf16.msra.mxu0 %v710
    %941 = vmatpush.bf16.msra.mxu0 %v703
    %942 = vmatmul.bf16.gmra.mxu0 %v148
    %v943 = vpop.f32.mrf.mxu0
    %v944 = vadd.f32 %v931, %v943
    %v945 = vpop.f32.mrf.mxu0
    %946 = vdwg.mxu0
    %947 = vmatpush.bf16.msra.mxu0 %v697
    %948 = vmatpush.bf16.msra.mxu0 %v690
    %949 = vmatpush.bf16.msra.mxu0 %v683
    %950 = vmatpush.bf16.msra.mxu0 %v676
    %951 = vmatpush.bf16.msra.mxu0 %v669
    %952 = vmatpush.bf16.msra.mxu0 %v662
    %953 = vmatpush.bf16.msra.mxu0 %v655
    %954 = vmatpush.bf16.msra.mxu0 %v648
    %955 = vmatmul.bf16.gmra.mxu0 %v147
    %v956 = vpop.f32.mrf.mxu0
    %v957 = vadd.f32 %v282, %v956
    %v958 = vpop.f32.mrf.mxu0
    %959 = vdwg.mxu0
    %960 = vmatpush.bf16.msra.mxu0 %v753
    %961 = vmatpush.bf16.msra.mxu0 %v746
    %962 = vmatpush.bf16.msra.mxu0 %v739
    %963 = vmatpush.bf16.msra.mxu0 %v732
    %964 = vmatpush.bf16.msra.mxu0 %v725
    %965 = vmatpush.bf16.msra.mxu0 %v718
    %966 = vmatpush.bf16.msra.mxu0 %v711
    %967 = vmatpush.bf16.msra.mxu0 %v704
    %968 = vmatmul.bf16.gmra.mxu0 %v148
    %v969 = vpop.f32.mrf.mxu0
    %v970 = vadd.f32 %v957, %v969
    %v971 = vpop.f32.mrf.mxu0
    %972 = vdwg.mxu0
    %973 = vmatpush.bf16.msra.mxu0 %v698
    %974 = vmatpush.bf16.msra.mxu0 %v691
    %975 = vmatpush.bf16.msra.mxu0 %v684
    %976 = vmatpush.bf16.msra.mxu0 %v677
    %977 = vmatpush.bf16.msra.mxu0 %v670
    %978 = vmatpush.bf16.msra.mxu0 %v663
    %979 = vmatpush.bf16.msra.mxu0 %v656
    %980 = vmatpush.bf16.msra.mxu0 %v649
    %981 = vmatmul.bf16.gmra.mxu0 %v147
    %v982 = vpop.f32.mrf.mxu0
    %v983 = vadd.f32 %v283, %v982
    %v984 = vpop.f32.mrf.mxu0
    %985 = vdwg.mxu0
    %986 = vmatpush.bf16.msra.mxu0 %v754
    %987 = vmatpush.bf16.msra.mxu0 %v747
    %988 = vmatpush.bf16.msra.mxu0 %v740
    %989 = vmatpush.bf16.msra.mxu0 %v733
    %990 = vmatpush.bf16.msra.mxu0 %v726
    %991 = vmatpush.bf16.msra.mxu0 %v719
    %992 = vmatpush.bf16.msra.mxu0 %v712
    %993 = vmatpush.bf16.msra.mxu0 %v705
    %994 = vmatmul.bf16.gmra.mxu0 %v148
    %v995 = vpop.f32.mrf.mxu0
    %v996 = vadd.f32 %v983, %v995
    %v997 = vpop.f32.mrf.mxu0
    %998 = vdwg.mxu0
    %999 = vmatpush.bf16.msra.mxu0 %v699
    %1000 = vmatpush.bf16.msra.mxu0 %v692
    %1001 = vmatpush.bf16.msra.mxu0 %v685
    %1002 = vmatpush.bf16.msra.mxu0 %v678
    %1003 = vmatpush.bf16.msra.mxu0 %v671
    %1004 = vmatpush.bf16.msra.mxu0 %v664
    %1005 = vmatpush.bf16.msra.mxu0 %v657
    %1006 = vmatpush.bf16.msra.mxu0 %v650
    %1007 = vmatmul.bf16.gmra.mxu0 %v147
    %v1008 = vpop.f32.mrf.mxu0
    %v1009 = vadd.f32 %v284, %v1008
    %v1010 = vpop.f32.mrf.mxu0
    %1011 = vdwg.mxu0
    %1012 = vmatpush.bf16.msra.mxu0 %v755
    %1013 = vmatpush.bf16.msra.mxu0 %v748
    %1014 = vmatpush.bf16.msra.mxu0 %v741
    %1015 = vmatpush.bf16.msra.mxu0 %v734
    %1016 = vmatpush.bf16.msra.mxu0 %v727
    %1017 = vmatpush.bf16.msra.mxu0 %v720
    %1018 = vmatpush.bf16.msra.mxu0 %v713
    %1019 = vmatpush.bf16.msra.mxu0 %v706
    %1020 = vmatmul.bf16.gmra.mxu0 %v148
    %v1021 = vpop.f32.mrf.mxu0
    %v1022 = vadd.f32 %v1009, %v1021
    %v1023 = vpop.f32.mrf.mxu0
    %1024 = vdwg.mxu0
    %1025 = vmatpush.bf16.msra.mxu0 %v700
    %1026 = vmatpush.bf16.msra.mxu0 %v693
    %1027 = vmatpush.bf16.msra.mxu0 %v686
    %1028 = vmatpush.bf16.msra.mxu0 %v679
    %1029 = vmatpush.bf16.msra.mxu0 %v672
    %1030 = vmatpush.bf16.msra.mxu0 %v665
    %1031 = vmatpush.bf16.msra.mxu0 %v658
    %1032 = vmatpush.bf16.msra.mxu0 %v651
    %1033 = vmatmul.bf16.gmra.mxu0 %v147
    %v1034 = vpop.f32.mrf.mxu0
    %v1035 = vadd.f32 %v285, %v1034
    %v1036 = vpop.f32.mrf.mxu0
    %1037 = vdwg.mxu0
    %1038 = vmatpush.bf16.msra.mxu0 %v756
    %1039 = vmatpush.bf16.msra.mxu0 %v749
    %1040 = vmatpush.bf16.msra.mxu0 %v742
    %1041 = vmatpush.bf16.msra.mxu0 %v735
    %1042 = vmatpush.bf16.msra.mxu0 %v728
    %1043 = vmatpush.bf16.msra.mxu0 %v721
    %1044 = vmatpush.bf16.msra.mxu0 %v714
    %1045 = vmatpush.bf16.msra.mxu0 %v707
    %1046 = vmatmul.bf16.gmra.mxu0 %v148
    %v1047 = vpop.f32.mrf.mxu0
    %v1048 = vadd.f32 %v1035, %v1047
    %v1049 = vpop.f32.mrf.mxu0
    %1050 = vdwg.mxu0
    %v1051 = vmul.f32 %v892, 0.5
    %v1052 = vmul.f32 %v918, 0.5
    %v1053 = vmul.f32 %v944, 0.5
    %v1054 = vmul.f32 %v970, 0.5
    %v1055 = vmul.f32 %v996, 0.5
    %v1056 = vmul.f32 %v1022, 0.5
    %v1057 = vmul.f32 %v1048, 0.5
    %v1058 = vtanh.pop %v1051
    %v1059 = vtanh.pop %v1052
    %v1060 = vtanh.pop %v1053
    %v1061 = vtanh.pop %v1054
    %v1062 = vtanh.pop %v1055
    %v1063 = vtanh.pop %v1056
    %v1064 = vtanh.pop %v1057
    %v1065 = vmul.f32 %v1058, 0.5
    %v1066 = vmul.f32 %v1059, 0.5
    %v1067 = vmul.f32 %v1060, 0.5
    %v1068 = vmul.f32 %v1061, 0.5
    %v1069 = vmul.f32 %v1062, 0.5
    %v1070 = vmul.f32 %v1063, 0.5
    %v1071 = vmul.f32 %v1064, 0.5
    %v1072 = vadd.f32 %v1065, 0.5
    %v1073 = vadd.f32 %v1066, 0.5
    %v1074 = vadd.f32 %v1067, 0.5
    %v1075 = vadd.f32 %v1068, 0.5
    %v1076 = vadd.f32 %v1069, 0.5
    %v1077 = vadd.f32 %v1070, 0.5
    %v1078 = vadd.f32 %v1071, 0.5
    %1079 = vst [vmem:[#allocation2] sm:$0xff] %v1072
    %1080 = vst [vmem:[#allocation2 + $0x8] sm:$0xff] %v1073
    %1081 = vst [vmem:[#allocation2 + $0x10] sm:$0xff] %v1074
    %1082 = vst [vmem:[#allocation2 + $0x18] sm:$0xff] %v1075
    %1083 = vst [vmem:[#allocation2 + $0x20] sm:$0xff] %v1076
    %1084 = vst [vmem:[#allocation2 + $0x28] sm:$0xff] %v1077
    %vm1085 = vcmask 130048
    %1086 = vst.msk [vmem:[#allocation2 + $0x30] sm:$0xff] %vm1085, %v1078
    // Predicated region
    $region22: #{tpu_custom_call.1} parent=1 // pred_check
      _
    $region23: #{tpu_custom_call.1} parent=1 // pred_check_branch
      %1088 = sbr.rel (0) target = $region25
    $region24: #{tpu_custom_call.1} parent=1 // pred_region
      %1090 = vsyncadd [#allocation3], 0
      %s1092 = sshll.u32 [#allocation2], 4
      %s1093 = int_to_ptr.vmem [resolvable:$true] %s1092
      %s1094 = sshll.u32 %s5, 4
      %s1095 = int_to_ptr.hbm [resolvable:$true] %s1094
      %1097 = dma.vmem_to_hbm [thread:$0]  %s1093, 896, %s1095, [#allocation3]
    $region25: #{tpu_custom_call.1} parent=1 // pred_fallthru
      _
    // Predicated region
    $region26: #{tpu_custom_call.1} parent=1 // pred_check
      _
    $region27: #{tpu_custom_call.1} parent=1 // pred_check_branch
      %1099 = sbr.rel (0) target = $region29
    $region28: #{tpu_custom_call.1} parent=1 // pred_region
      %1101 = dma.done [#allocation3], 896
    $region29: #{tpu_custom_call.1} parent=1 // pred_fallthru
      _
    %1102 = vsyncpa [#allocation3], 1

</llo_original>
